<compile_context>
chip_gen: v7x
topology: tpu7x:2x2x1
jax: 0.10.0
libtpu: 0.0.40
codegen_flags: <defaults>
</compile_context>

<pallas_src>
import math

import jax
import jax.numpy as jnp
from jax.experimental import pallas as pl
from jax.experimental.pallas import tpu as pltpu

LANE = 128
SUBLANE = 8


def _round_up(a, b):
    return (a + b - 1) // b * b


def _hash_u32(x):
    """lowbias32-style avalanche hash; plain 32-bit VPU integer ops only."""
    x = x ^ (x >> 16)
    x = x * jnp.uint32(0x7FEB352D)
    x = x ^ (x >> 15)
    x = x * jnp.uint32(0x846CA68B)
    x = x ^ (x >> 16)
    return x


def _keep_mask(shape, row_offset_u32, row_stride, seed_u32):
    """Bernoulli(0.5) keep mask, stateless, decorrelated across tiles/layers."""
    r = jax.lax.broadcasted_iota(jnp.int32, shape, 0).astype(jnp.uint32) + row_offset_u32
    c = jax.lax.broadcasted_iota(jnp.int32, shape, 1).astype(jnp.uint32)
    idx = r * jnp.uint32(row_stride) + c
    h = _hash_u32(idx + seed_u32 * jnp.uint32(2654435761))
    return (h & jnp.uint32(1)) == 0


def _prenet_kernel(seed_ref, x_ref, *rest):
    """Fused Prenet: h = x; for each layer: h = drop(relu(h @ W_l), p=0.5)*2.

    seed_ref : SMEM int32[num_layers]  — per-layer dropout seeds
    x_ref    : VMEM bf16[tile_m, K_pad]
    w_refs   : VMEM bf16[in_pad_l, out_pad_l]  (pre-transposed, lane-padded)
    o_ref    : VMEM f32[tile_m, N_out_pad]
    """
    *w_refs, o_ref = rest
    tile_m = x_ref.shape[0]
    row_off = (pl.program_id(0) * tile_m).astype(jnp.uint32)

    h = x_ref[...]  # bf16
    for li, w_ref in enumerate(w_refs):
        n_pad = w_ref.shape[1]
        # Linear (bias=False) on the MXU, f32 accumulation.
        y = jnp.dot(h.astype(jnp.bfloat16), w_ref[...],
                    preferred_element_type=jnp.float32)
        # ReLU in f32 on the accumulator.
        y = jnp.maximum(y, 0.0)
        # Inverted dropout, p = 0.5 (always on), scale kept values by 2.
        layer_seed = seed_ref[li].astype(jnp.uint32) + jnp.uint32((li * 0x9E3779B1) & 0xFFFFFFFF)
        keep = _keep_mask(y.shape, row_off, n_pad, layer_seed)
        h = jnp.where(keep, y * 2.0, 0.0)  # f32

    o_ref[...] = h.astype(o_ref.dtype)


def xavier_uniform(key, out_dim, in_dim, gain=1.0, dtype=jnp.float32):
    """torch.nn.init.xavier_uniform_ for a [out, in] Linear weight."""
    bound = gain * math.sqrt(6.0 / (in_dim + out_dim))
    return jax.random.uniform(key, (out_dim, in_dim), dtype=dtype,
                              minval=-bound, maxval=bound)


def make_prenet_params(key, in_dim, sizes):
    """Prenet parameters: list of [out, in] weights (bias=False), PyTorch layout."""
    in_sizes = [in_dim] + list(sizes[:-1])
    weights = []
    for i_sz, o_sz in zip(in_sizes, sizes):
        key, sub = jax.random.split(key)
        weights.append(xavier_uniform(sub, o_sz, i_sz, gain=1.0))
    return weights


def prenet_forward(x, weights, seeds=None, *, tile_m_max=512):
    """Prenet forward. x: [B, T, in_dim] f32 -> [B, T, sizes[-1]] f32."""
    B, T, in_dim = x.shape
    num_layers = len(weights)
    if seeds is None:
        seeds = jnp.arange(num_layers, dtype=jnp.int32)
    seeds = jnp.asarray(seeds, dtype=jnp.int32) & jnp.int32(0x7FFFFFFF)

    # ---- token-dim tiling -------------------------------------------------
    M = B * T
    tile_m = min(tile_m_max, _round_up(M, SUBLANE))
    grid_m = pl.cdiv(M, tile_m)
    m_pad = grid_m * tile_m

    # ---- lane padding + bf16 cast (done once, outside the kernel) ---------
    k_pad = _round_up(in_dim, LANE)
    x2d = x.reshape(M, in_dim).astype(jnp.bfloat16)
    x2d = jnp.pad(x2d, ((0, m_pad - M), (0, k_pad - in_dim)))

    w_ts = []          # pre-transposed [in_pad, out_pad] bf16 weights
    dims = [k_pad]     # padded feature dims along the layer chain
    for w in weights:
        w = jnp.asarray(w, dtype=jnp.float32)
        out_dim, i_dim = w.shape
        i_pad, o_pad = dims[-1], _round_up(out_dim, LANE)
        wt = jnp.zeros((i_pad, o_pad), jnp.float32).at[:i_dim, :out_dim].set(w.T)
        w_ts.append(wt.astype(jnp.bfloat16))
        dims.append(o_pad)
    n_out = weights[-1].shape[0]
    n_out_pad = dims[-1]

    # ---- specs -------------------------------------------------------------
    in_specs = [pl.BlockSpec(memory_space=pltpu.MemorySpace.SMEM)]          # seeds
    in_specs.append(pl.BlockSpec((tile_m, k_pad), lambda i: (i, 0)))        # x tile
    for wt in w_ts:                                                         # resident weights
        in_specs.append(pl.BlockSpec(wt.shape, lambda i: (0, 0)))
    out_spec = pl.BlockSpec((tile_m, n_out_pad), lambda i: (i, 0))

    # ---- explicit VMEM budget: 2x (x tile + out tile) + weights + slack ----
    bytes_x_tile = tile_m * k_pad * 2
    bytes_out_tile = tile_m * n_out_pad * 4
    bytes_weights = sum(int(w.size) * 2 for w in w_ts)
    bytes_inter = tile_m * max(dims) * 4
    need = 2 * (bytes_x_tile + bytes_out_tile) + 2 * bytes_weights + 4 * bytes_inter
    vmem_limit = int(min(max(need + (8 << 20), 32 << 20), 48 << 20))

    out = pl.pallas_call(
        _prenet_kernel,
        out_shape=jax.ShapeDtypeStruct((m_pad, n_out_pad), jnp.float32),
        grid=(grid_m,),
        in_specs=in_specs,
        out_specs=out_spec,
        compiler_params=pltpu.CompilerParams(
            dimension_semantics=("parallel",),
            vmem_limit_bytes=vmem_limit,
        ),
    )(seeds, x2d, *w_ts)

    return out[:M, :n_out].reshape(B, T, n_out)


if __name__ == "__main__":
    key = jax.random.PRNGKey(0)
    k_x, k_w = jax.random.split(key)

    # Small, Tacotron2-consistent shapes: x = [batch, seq, n_mels], Prenet 256x2.
    B, T, in_dim = 2, 8, 80
    sizes = [256, 256]

    x = jax.random.normal(k_x, (B, T, in_dim), dtype=jnp.float32)
    weights = make_prenet_params(k_w, in_dim, sizes)
    seeds = jnp.array([1234, 5678], dtype=jnp.int32)   # fresh per-step seeds in training

    out = prenet_forward(x, weights, seeds=seeds)
    out = jax.block_until_ready(out)

    assert out.shape == (B, T, sizes[-1]), out.shape
    assert out.dtype == jnp.float32
    assert bool(jnp.all(jnp.isfinite(out)))
    zero_frac = float(jnp.mean(out == 0.0))
    # ReLU + always-on dropout(p=0.5) must zero a substantial fraction.
    assert 0.25 < zero_frac < 0.999, zero_frac
    assert bool(jnp.any(out != 0.0))
    # TODO(synk): dropout RNG stream is statistically equivalent to (but not
    # bit-identical with) torch.nn.functional.dropout's PRNG.
    print("KERNEL_OK")
</pallas_src>

<mosaic_0001>
module attributes {stable_mosaic.version = 11 : i64} {
  func.func @_prenet_kernel(%arg0: i32, %arg1: memref<2xi32, #tpu.memory_space<smem>>, %arg2: memref<16x128xbf16, #tpu.memory_space<vmem>>, %arg3: memref<128x256xbf16, #tpu.memory_space<vmem>>, %arg4: memref<256x256xbf16, #tpu.memory_space<vmem>>, %arg5: memref<16x256xf32, #tpu.memory_space<vmem>>) attributes {dimension_semantics = [#tpu.dimension_semantics<parallel>], iteration_bounds = array<i64: 1>, scalar_prefetch = 0 : i64, scratch_operands = 0 : i64, tpu.core_type = #tpu.core_type<tc>, window_params = [{transform_indices = @transform_0, window_bounds = array<i64: 2>}, {transform_indices = @transform_1, window_bounds = array<i64: 16, 128>}, {pipeline_mode = #tpu.pipeline_mode<synchronous>, transform_indices = @transform_2, window_bounds = array<i64: 128, 256>}, {pipeline_mode = #tpu.pipeline_mode<synchronous>, transform_indices = @transform_3, window_bounds = array<i64: 256, 256>}, {transform_indices = @transform_4, window_bounds = array<i64: 16, 256>}]} {
    %c16_i32 = arith.constant 16 : i32
    %0 = arith.muli %arg0, %c16_i32 : i32
    %c0 = arith.constant 0 : index
    %c0_0 = arith.constant 0 : index
    %1 = vector.load %arg2[%c0, %c0_0] : memref<16x128xbf16, #tpu.memory_space<vmem>>, vector<16x128xbf16>
    %c0_1 = arith.constant 0 : index
    %c0_2 = arith.constant 0 : index
    %2 = vector.load %arg3[%c0_1, %c0_2] : memref<128x256xbf16, #tpu.memory_space<vmem>>, vector<128x256xbf16>
    %cst = arith.constant dense<0.000000e+00> : vector<16x256xf32>
    %3 = tpu.matmul %1, %2, %cst {dimension_numbers = #tpu.dot_dimension_numbers<[1], [0], [0], [1], [0, 0, 1, 1], [], []>} : vector<16x128xbf16>, vector<128x256xbf16>, vector<16x256xf32> -> vector<16x256xf32>
    %cst_3 = arith.constant 0.000000e+00 : f32
    %4 = vector.broadcast %cst_3 : f32 to vector<16x256xf32>
    %5 = arith.maximumf %3, %4 : vector<16x256xf32>
    %c0_4 = arith.constant 0 : index
    %6 = memref.load %arg1[%c0_4] : memref<2xi32, #tpu.memory_space<smem>>
    %c0_i32 = arith.constant 0 : i32
    %7 = arith.addi %6, %c0_i32 : i32
    %8 = tpu.iota {dimensions = array<i32: 0>} : vector<16x256xi32>
    %9 = vector.broadcast %0 : i32 to vector<16x256xi32>
    %10 = arith.addi %8, %9 : vector<16x256xi32>
    %11 = tpu.iota {dimensions = array<i32: 1>} : vector<16x256xi32>
    %c256_i32 = arith.constant 256 : i32
    %12 = vector.broadcast %c256_i32 : i32 to vector<16x256xi32>
    %13 = arith.muli %10, %12 : vector<16x256xi32>
    %14 = arith.addi %13, %11 : vector<16x256xi32>
    %c-1640531535_i32 = arith.constant -1640531535 : i32
    %15 = arith.muli %7, %c-1640531535_i32 : i32
    %16 = vector.broadcast %15 : i32 to vector<16x256xi32>
    %17 = arith.addi %14, %16 : vector<16x256xi32>
    %c16_i32_5 = arith.constant 16 : i32
    %18 = vector.broadcast %c16_i32_5 : i32 to vector<16x256xi32>
    %19 = arith.shrui %17, %18 : vector<16x256xi32>
    %20 = arith.xori %17, %19 : vector<16x256xi32>
    %c2146121005_i32 = arith.constant 2146121005 : i32
    %21 = vector.broadcast %c2146121005_i32 : i32 to vector<16x256xi32>
    %22 = arith.muli %20, %21 : vector<16x256xi32>
    %c15_i32 = arith.constant 15 : i32
    %23 = vector.broadcast %c15_i32 : i32 to vector<16x256xi32>
    %24 = arith.shrui %22, %23 : vector<16x256xi32>
    %25 = arith.xori %22, %24 : vector<16x256xi32>
    %c-2073254261_i32 = arith.constant -2073254261 : i32
    %26 = vector.broadcast %c-2073254261_i32 : i32 to vector<16x256xi32>
    %27 = arith.muli %25, %26 : vector<16x256xi32>
    %c16_i32_6 = arith.constant 16 : i32
    %28 = vector.broadcast %c16_i32_6 : i32 to vector<16x256xi32>
    %29 = arith.shrui %27, %28 : vector<16x256xi32>
    %30 = arith.xori %27, %29 : vector<16x256xi32>
    %c1_i32 = arith.constant 1 : i32
    %31 = vector.broadcast %c1_i32 : i32 to vector<16x256xi32>
    %32 = arith.andi %30, %31 : vector<16x256xi32>
    %c0_i32_7 = arith.constant 0 : i32
    %33 = vector.broadcast %c0_i32_7 : i32 to vector<16x256xi32>
    %34 = arith.cmpi eq, %32, %33 : vector<16x256xi32>
    %cst_8 = arith.constant 2.000000e+00 : f32
    %35 = vector.broadcast %cst_8 : f32 to vector<16x256xf32>
    %36 = arith.mulf %5, %35 : vector<16x256xf32>
    %cst_9 = arith.constant 0.000000e+00 : f32
    %37 = vector.broadcast %cst_9 : f32 to vector<16x256xf32>
    %38 = arith.select %34, %36, %37 : vector<16x256xi1>, vector<16x256xf32>
    %39 = arith.truncf %38 : vector<16x256xf32> to vector<16x256xbf16>
    %c0_10 = arith.constant 0 : index
    %c0_11 = arith.constant 0 : index
    %40 = vector.load %arg4[%c0_10, %c0_11] : memref<256x256xbf16, #tpu.memory_space<vmem>>, vector<256x256xbf16>
    %cst_12 = arith.constant dense<0.000000e+00> : vector<16x256xf32>
    %41 = tpu.matmul %39, %40, %cst_12 {dimension_numbers = #tpu.dot_dimension_numbers<[1], [0], [0], [1], [0, 0, 1, 1], [], []>} : vector<16x256xbf16>, vector<256x256xbf16>, vector<16x256xf32> -> vector<16x256xf32>
    %cst_13 = arith.constant 0.000000e+00 : f32
    %42 = vector.broadcast %cst_13 : f32 to vector<16x256xf32>
    %43 = arith.maximumf %41, %42 : vector<16x256xf32>
    %c1 = arith.constant 1 : index
    %44 = memref.load %arg1[%c1] : memref<2xi32, #tpu.memory_space<smem>>
    %c-1640531535_i32_14 = arith.constant -1640531535 : i32
    %45 = arith.addi %44, %c-1640531535_i32_14 : i32
    %46 = tpu.iota {dimensions = array<i32: 0>} : vector<16x256xi32>
    %47 = vector.broadcast %0 : i32 to vector<16x256xi32>
    %48 = arith.addi %46, %47 : vector<16x256xi32>
    %49 = tpu.iota {dimensions = array<i32: 1>} : vector<16x256xi32>
    %c256_i32_15 = arith.constant 256 : i32
    %50 = vector.broadcast %c256_i32_15 : i32 to vector<16x256xi32>
    %51 = arith.muli %48, %50 : vector<16x256xi32>
    %52 = arith.addi %51, %49 : vector<16x256xi32>
    %c-1640531535_i32_16 = arith.constant -1640531535 : i32
    %53 = arith.muli %45, %c-1640531535_i32_16 : i32
    %54 = vector.broadcast %53 : i32 to vector<16x256xi32>
    %55 = arith.addi %52, %54 : vector<16x256xi32>
    %c16_i32_17 = arith.constant 16 : i32
    %56 = vector.broadcast %c16_i32_17 : i32 to vector<16x256xi32>
    %57 = arith.shrui %55, %56 : vector<16x256xi32>
    %58 = arith.xori %55, %57 : vector<16x256xi32>
    %c2146121005_i32_18 = arith.constant 2146121005 : i32
    %59 = vector.broadcast %c2146121005_i32_18 : i32 to vector<16x256xi32>
    %60 = arith.muli %58, %59 : vector<16x256xi32>
    %c15_i32_19 = arith.constant 15 : i32
    %61 = vector.broadcast %c15_i32_19 : i32 to vector<16x256xi32>
    %62 = arith.shrui %60, %61 : vector<16x256xi32>
    %63 = arith.xori %60, %62 : vector<16x256xi32>
    %c-2073254261_i32_20 = arith.constant -2073254261 : i32
    %64 = vector.broadcast %c-2073254261_i32_20 : i32 to vector<16x256xi32>
    %65 = arith.muli %63, %64 : vector<16x256xi32>
    %c16_i32_21 = arith.constant 16 : i32
    %66 = vector.broadcast %c16_i32_21 : i32 to vector<16x256xi32>
    %67 = arith.shrui %65, %66 : vector<16x256xi32>
    %68 = arith.xori %65, %67 : vector<16x256xi32>
    %c1_i32_22 = arith.constant 1 : i32
    %69 = vector.broadcast %c1_i32_22 : i32 to vector<16x256xi32>
    %70 = arith.andi %68, %69 : vector<16x256xi32>
    %c0_i32_23 = arith.constant 0 : i32
    %71 = vector.broadcast %c0_i32_23 : i32 to vector<16x256xi32>
    %72 = arith.cmpi eq, %70, %71 : vector<16x256xi32>
    %cst_24 = arith.constant 2.000000e+00 : f32
    %73 = vector.broadcast %cst_24 : f32 to vector<16x256xf32>
    %74 = arith.mulf %43, %73 : vector<16x256xf32>
    %cst_25 = arith.constant 0.000000e+00 : f32
    %75 = vector.broadcast %cst_25 : f32 to vector<16x256xf32>
    %76 = arith.select %72, %74, %75 : vector<16x256xi1>, vector<16x256xf32>
    %c0_26 = arith.constant 0 : index
    %c0_27 = arith.constant 0 : index
    %77 = vector.load %arg5[%c0_26, %c0_27] : memref<16x256xf32, #tpu.memory_space<vmem>>, vector<16x256xf32>
    tpu.vector_store %arg5[%c0_26, %c0_27], %76 {strides = array<i32>} : memref<16x256xf32, #tpu.memory_space<vmem>>, vector<16x256xf32>,
    return
  }
  func.func @transform_0(%arg0: i32) -> i32 {
    %c0_i32 = arith.constant 0 : i32
    %c0_i32_0 = arith.constant 0 : i32
    return %c0_i32 : i32
  }
  func.func @transform_1(%arg0: i32) -> (i32, i32) {
    %c0_i32 = arith.constant 0 : i32
    %c0_i32_0 = arith.constant 0 : i32
    return %arg0, %c0_i32 : i32, i32
  }
  func.func @transform_2(%arg0: i32) -> (i32, i32) {
    %c0_i32 = arith.constant 0 : i32
    %c0_i32_0 = arith.constant 0 : i32
    %c0_i32_1 = arith.constant 0 : i32
    return %c0_i32, %c0_i32_0 : i32, i32
  }
  func.func @transform_3(%arg0: i32) -> (i32, i32) {
    %c0_i32 = arith.constant 0 : i32
    %c0_i32_0 = arith.constant 0 : i32
    %c0_i32_1 = arith.constant 0 : i32
    return %c0_i32, %c0_i32_0 : i32, i32
  }
  func.func @transform_4(%arg0: i32) -> (i32, i32) {
    %c0_i32 = arith.constant 0 : i32
    %c0_i32_0 = arith.constant 0 : i32
    return %arg0, %c0_i32 : i32, i32
  }
}

</mosaic_0001>

<llo_original>
// kernel: tpu_custom_call.1
$region0: #{tpu_custom_call.1}
  #allocation0 [shape = 'u32[]', space=smem, size = 0x4, offset = 0x4, fixed_abs, tag = 'smem constant byte address 0x4 - core index']
  #allocation1 [shape = 'u32[144,128]{1,0:T(1,128)}', space=vmem, size = 0x12000, scoped, tag = 'internal scratch']
  %s0 = inlined_call_operand.hbm [shape: s32[2], index: 0, kind: input, shape index: {}]
  %s1 = inlined_call_operand.hbm [shape: bf16[16,128], index: 1, kind: input, shape index: {}]
  %s2 = inlined_call_operand.hbm [shape: bf16[128,256], index: 2, kind: input, shape index: {}]
  %s3 = inlined_call_operand.hbm [shape: bf16[256,256], index: 3, kind: input, shape index: {}]
  %s4 = inlined_call_operand.hbm [shape: f32[16,256], index: 4, kind: output, shape index: {}]
  %s5 = sld [smem:[#allocation0]]
  $region42: #{tpu_custom_call.1} parent=0
    _
  %s7 = ssub.s32 1, %s5
  %s8 = scalar_select 0, %s7, %s5
  $region1: #{tpu_custom_call.1} parent=0
    #allocation2 [shape = 'u8[512]{0}', space=smem, size = 0x200, scoped, tag = 'input window, operand 0, single buffered']
    #allocation3 [shape = 's32[1]{0}', space=sflag, size = 0x4, scoped, tag = 'scoped memory for tpu_custom_call.1']
    #allocation4 [shape = 's32[1]{0}', space=sflag, size = 0x4, scoped, tag = 'scoped memory for tpu_custom_call.1']
    #allocation5 [shape = 's32[1]{0}', space=sflag, size = 0x4, scoped, tag = 'scoped memory for tpu_custom_call.1']
    #allocation6 [shape = 'u8[4096]{0}', space=vmem, size = 0x1000, scoped, tag = 'input window, operand 1, single buffered']
    #allocation7 [shape = 'u8[65536]{0}', space=vmem, size = 0x10000, scoped, tag = 'input window, operand 2, single buffered']
    #allocation8 [shape = 's32[1]{0}', space=sflag, size = 0x4, scoped, tag = 'scoped memory for tpu_custom_call.1']
    #allocation9 [shape = 'u8[131072]{0}', space=vmem, size = 0x20000, scoped, tag = 'input window, operand 3, single buffered']
    #allocation10 [shape = 'u8[16384]{0}', space=vmem, size = 0x4000, scoped, tag = 'output window, operand 0, single buffered']
    %9 = vsyncpa [#allocation5], 0
    %10 = vsyncpa [#allocation3], 0
    %11 = vsyncpa [#allocation8], 0
    %12 = vsyncpa [#allocation4], 0
    // Predicated region
    $region2: #{tpu_custom_call.1} parent=1 // pred_check
      _
    $region3: #{tpu_custom_call.1} parent=1 // pred_check_branch
      %14 = sbr.rel (0) target = $region5
    $region4: #{tpu_custom_call.1} parent=1 // pred_region
      %s16 = ssub.s32 16, 16
      %17 = vsyncadd [#allocation5], %s16
      %20 = dma.hbm_to_smem %s0, 16, [#allocation2], [#allocation5]
    $region5: #{tpu_custom_call.1} parent=1 // pred_fallthru
      _
    // Predicated region
    $region6: #{tpu_custom_call.1} parent=1 // pred_check
      _
    $region7: #{tpu_custom_call.1} parent=1 // pred_check_branch
      %22 = sbr.rel (0) target = $region9
    $region8: #{tpu_custom_call.1} parent=1 // pred_region
      %s24 = ssub.s32 128, 128
      %25 = vsyncadd [#allocation3], %s24
      %s26 = sshll.u32 [#allocation6], 4
      %s27 = int_to_ptr.vmem [resolvable:$true] %s26
      %32 = dma.hbm_to_vmem [thread:$0]  %s1, 128, %s27, [#allocation3], 64, 64, 4
    $region9: #{tpu_custom_call.1} parent=1 // pred_fallthru
      _
    // Predicated region
    $region10: #{tpu_custom_call.1} parent=1 // pred_check
      _
    $region11: #{tpu_custom_call.1} parent=1 // pred_check_branch
      %34 = sbr.rel (0) target = $region13
    $region12: #{tpu_custom_call.1} parent=1 // pred_region
      %s36 = ssub.s32 2048, 2048
      %37 = vsyncadd [#allocation8], %s36
      %s38 = sshll.u32 [#allocation7], 4
      %s39 = int_to_ptr.vmem [resolvable:$true] %s38
      %44 = dma.hbm_to_vmem [thread:$0]  %s2, 2048, %s39, [#allocation8], 128, 128, 8
    $region13: #{tpu_custom_call.1} parent=1 // pred_fallthru
      _
    // Predicated region
    $region14: #{tpu_custom_call.1} parent=1 // pred_check
      _
    $region15: #{tpu_custom_call.1} parent=1 // pred_check_branch
      %46 = sbr.rel (0) target = $region17
    $region16: #{tpu_custom_call.1} parent=1 // pred_region
      %s48 = ssub.s32 4096, 4096
      %49 = vsyncadd [#allocation8], %s48
      %s50 = sshll.u32 [#allocation9], 4
      %s51 = int_to_ptr.vmem [resolvable:$true] %s50
      %56 = dma.hbm_to_vmem [thread:$0]  %s3, 4096, %s51, [#allocation8], 128, 128, 8
    $region17: #{tpu_custom_call.1} parent=1 // pred_fallthru
      _
    // Predicated region
    $region18: #{tpu_custom_call.1} parent=1 // pred_check
      _
    $region19: #{tpu_custom_call.1} parent=1 // pred_check_branch
      %58 = sbr.rel (0) target = $region21
    $region20: #{tpu_custom_call.1} parent=1 // pred_region
      %59 = dma.done [#allocation5], 16
    $region21: #{tpu_custom_call.1} parent=1 // pred_fallthru
      _
    // Predicated region
    $region22: #{tpu_custom_call.1} parent=1 // pred_check
      _
    $region23: #{tpu_custom_call.1} parent=1 // pred_check_branch
      %61 = sbr.rel (0) target = $region25
    $region24: #{tpu_custom_call.1} parent=1 // pred_region
      %62 = dma.done [#allocation3], 128
    $region25: #{tpu_custom_call.1} parent=1 // pred_fallthru
      _
    // Predicated region
    $region26: #{tpu_custom_call.1} parent=1 // pred_check
      _
    $region27: #{tpu_custom_call.1} parent=1 // pred_check_branch
      %64 = sbr.rel (0) target = $region29
    $region28: #{tpu_custom_call.1} parent=1 // pred_region
      %65 = dma.done [#allocation8], 2048
    $region29: #{tpu_custom_call.1} parent=1 // pred_fallthru
      _
    // Predicated region
    $region30: #{tpu_custom_call.1} parent=1 // pred_check
      _
    $region31: #{tpu_custom_call.1} parent=1 // pred_check_branch
      %67 = sbr.rel (0) target = $region33
    $region32: #{tpu_custom_call.1} parent=1 // pred_region
      %68 = dma.done [#allocation8], 4096
    $region33: #{tpu_custom_call.1} parent=1 // pred_fallthru
      _
    %69 = sfence
    %s71 = smul.u32 0, 16
    %v72 = vld [vmem:[#allocation6] sm:$0xf]
    %v73 = vld [vmem:[#allocation6 + $0x4] sm:$0xf]
    %v74 = vld [vmem:[#allocation7] sm:$0xff]
    %v75 = vld [vmem:[#allocation7 + $0x8] sm:$0xff]
    %v76 = vld [vmem:[#allocation7 + $0x10] sm:$0xff]
    %v77 = vld [vmem:[#allocation7 + $0x18] sm:$0xff]
    %v78 = vld [vmem:[#allocation7 + $0x20] sm:$0xff]
    %v79 = vld [vmem:[#allocation7 + $0x28] sm:$0xff]
    %v80 = vld [vmem:[#allocation7 + $0x30] sm:$0xff]
    %v81 = vld [vmem:[#allocation7 + $0x38] sm:$0xff]
    %v82 = vld [vmem:[#allocation7 + $0x40] sm:$0xff]
    %v83 = vld [vmem:[#allocation7 + $0x48] sm:$0xff]
    %v84 = vld [vmem:[#allocation7 + $0x50] sm:$0xff]
    %v85 = vld [vmem:[#allocation7 + $0x58] sm:$0xff]
    %v86 = vld [vmem:[#allocation7 + $0x60] sm:$0xff]
    %v87 = vld [vmem:[#allocation7 + $0x68] sm:$0xff]
    %v88 = vld [vmem:[#allocation7 + $0x70] sm:$0xff]
    %v89 = vld [vmem:[#allocation7 + $0x78] sm:$0xff]
    %v92 = vunpack.c.l.b16 %v72
    %v93 = vunpack.c.l.b16 %v73
    %v94 = vpack.c.b16 %v93, %v92
    %v112 = vunpack.c.l.b16 %v74
    %v113 = vunpack.c.h.b16 %v74
    %v114 = vunpack.c.l.b16 %v75
    %v115 = vunpack.c.h.b16 %v75
    %v116 = vunpack.c.l.b16 %v76
    %v117 = vunpack.c.h.b16 %v76
    %v118 = vunpack.c.l.b16 %v77
    %v119 = vunpack.c.h.b16 %v77
    %v120 = vunpack.c.l.b16 %v78
    %v121 = vunpack.c.h.b16 %v78
    %v122 = vunpack.c.l.b16 %v79
    %v123 = vunpack.c.h.b16 %v79
    %v124 = vunpack.c.l.b16 %v80
    %v125 = vunpack.c.h.b16 %v80
    %v126 = vunpack.c.l.b16 %v81
    %v127 = vunpack.c.h.b16 %v81
    %v128 = vunpack.c.l.b16 %v82
    %v129 = vunpack.c.h.b16 %v82
    %v130 = vunpack.c.l.b16 %v83
    %v131 = vunpack.c.h.b16 %v83
    %v132 = vunpack.c.l.b16 %v84
    %v133 = vunpack.c.h.b16 %v84
    %v134 = vunpack.c.l.b16 %v85
    %v135 = vunpack.c.h.b16 %v85
    %v136 = vunpack.c.l.b16 %v86
    %v137 = vunpack.c.h.b16 %v86
    %v138 = vunpack.c.l.b16 %v87
    %v139 = vunpack.c.h.b16 %v87
    %v140 = vunpack.c.l.b16 %v88
    %v141 = vunpack.c.h.b16 %v88
    %v142 = vunpack.c.l.b16 %v89
    %v143 = vunpack.c.h.b16 %v89
    %v144 = vpack.c.b16 %v114, %v112
    %v145 = vpack.c.b16 %v115, %v113
    %v146 = vpack.c.b16 %v118, %v116
    %v147 = vpack.c.b16 %v119, %v117
    %v148 = vpack.c.b16 %v122, %v120
    %v149 = vpack.c.b16 %v123, %v121
    %v150 = vpack.c.b16 %v126, %v124
    %v151 = vpack.c.b16 %v127, %v125
    %v152 = vpack.c.b16 %v130, %v128
    %v153 = vpack.c.b16 %v131, %v129
    %v154 = vpack.c.b16 %v134, %v132
    %v155 = vpack.c.b16 %v135, %v133
    %v156 = vpack.c.b16 %v138, %v136
    %v157 = vpack.c.b16 %v139, %v137
    %v158 = vpack.c.b16 %v142, %v140
    %v159 = vpack.c.b16 %v143, %v141
    %176 = vmatprep.subr.bf16.mxu0 %v145
    %177 = vmatpush1.bf16.msra.mxu0 %v144
    %178 = vmatprep.subr.bf16.mxu0 %v147
    %179 = vmatpush1.bf16.msra.mxu0 %v146
    %180 = vmatprep.subr.bf16.mxu0 %v149
    %181 = vmatpush1.bf16.msra.mxu0 %v148
    %182 = vmatprep.subr.bf16.mxu0 %v151
    %183 = vmatpush1.bf16.msra.mxu0 %v150
    %184 = vmatprep.subr.bf16.mxu0 %v153
    %185 = vmatpush1.bf16.msra.mxu0 %v152
    %186 = vmatprep.subr.bf16.mxu0 %v155
    %187 = vmatpush1.bf16.msra.mxu0 %v154
    %188 = vmatprep.subr.bf16.mxu0 %v157
    %189 = vmatpush1.bf16.msra.mxu0 %v156
    %190 = vmatprep.subr.bf16.mxu0 %v159
    %191 = vmatpush1.bf16.msra.mxu0 %v158
    %192 = vmatprep.subr.bf16.mxu0 0
    %193 = vmatpush1.bf16.msra.mxu0 0
    %194 = vmatprep.subr.bf16.mxu0 0
    %195 = vmatpush1.bf16.msra.mxu0 0
    %196 = vmatprep.subr.bf16.mxu0 0
    %197 = vmatpush1.bf16.msra.mxu0 0
    %198 = vmatprep.subr.bf16.mxu0 0
    %199 = vmatpush1.bf16.msra.mxu0 0
    %200 = vmatprep.subr.bf16.mxu0 0
    %201 = vmatpush1.bf16.msra.mxu0 0
    %202 = vmatprep.subr.bf16.mxu0 0
    %203 = vmatpush1.bf16.msra.mxu0 0
    %204 = vmatprep.subr.bf16.mxu0 0
    %205 = vmatpush1.bf16.msra.mxu0 0
    %206 = vmatprep.subr.bf16.mxu0 0
    %207 = vmatpush1.bf16.msra.mxu0 0
    %208 = vmatprep.mubr.bf16.mxu0 0
    %209 = vmatmul.mubr.bf16.gmra.mrb[0].mxu0 %v94
    %v210 = vpop.f32.mrb[0].mxu0
    %v211 = vadd.f32 0.0, %v210
    %v212 = vpop.f32.mrb[0].mxu0
    %v213 = vadd.f32 0.0, %v212
    %v214 = vpop.f32.mrb[0].mxu0
    %v215 = vadd.f32 0.0, %v214
    %v216 = vpop.f32.mrb[0].mxu0
    %v217 = vadd.f32 0.0, %v216
    %218 = vdwg.mxu0
    %v219 = vmax.f32 %v211, 0.0
    %v220 = vmax.f32 %v213, 0.0
    %v221 = vmax.f32 %v215, 0.0
    %v222 = vmax.f32 %v217, 0.0
    %s223 = sld [smem:[#allocation2]]
    %v224 = vlaneseq
    %v225 = vshrl.u32 %v224, 7
    %v226 = vadd.s32 %v225, 8
    %v227 = vstv %s71
    %v228 = vadd.s32 %v225, %v227
    %v229 = vadd.s32 %v226, %v227
    %v230 = vlaneseq
    %v231 = vand.u32 %v230, 127
    %v232 = vadd.s32 %v231, 128
    %v233 = vmul.u32 %v228, 256
    %v234 = vmul.u32 %v229, 256
    %v235 = vadd.s32 %v233, %v231
    %v236 = vadd.s32 %v233, %v232
    %v237 = vadd.s32 %v234, %v231
    %v238 = vadd.s32 %v234, %v232
    %s239 = smul.u32 %s223, 2654435761
    %v240 = vstv %s239
    %v241 = vadd.s32 %v235, %v240
    %v242 = vadd.s32 %v236, %v240
    %v243 = vadd.s32 %v237, %v240
    %v244 = vadd.s32 %v238, %v240
    %v245 = vshrl.u32 %v241, 16
    %v246 = vshrl.u32 %v242, 16
    %v247 = vshrl.u32 %v243, 16
    %v248 = vshrl.u32 %v244, 16
    %v249 = vxor.u32 %v241, %v245
    %v250 = vxor.u32 %v242, %v246
    %v251 = vxor.u32 %v243, %v247
    %v252 = vxor.u32 %v244, %v248
    %v253 = vmul.u32 %v249, 2146121005
    %v254 = vmul.u32 %v250, 2146121005
    %v255 = vmul.u32 %v251, 2146121005
    %v256 = vmul.u32 %v252, 2146121005
    %v257 = vshrl.u32 %v253, 15
    %v258 = vshrl.u32 %v254, 15
    %v259 = vshrl.u32 %v255, 15
    %v260 = vshrl.u32 %v256, 15
    %v261 = vxor.u32 %v253, %v257
    %v262 = vxor.u32 %v254, %v258
    %v263 = vxor.u32 %v255, %v259
    %v264 = vxor.u32 %v256, %v260
    %v265 = vmul.u32 %v261, 2221713035
    %v266 = vmul.u32 %v262, 2221713035
    %v267 = vmul.u32 %v263, 2221713035
    %v268 = vmul.u32 %v264, 2221713035
    %v269 = vshrl.u32 %v265, 16
    %v270 = vshrl.u32 %v266, 16
    %v271 = vshrl.u32 %v267, 16
    %v272 = vshrl.u32 %v268, 16
    %v273 = vxor.u32 %v265, %v269
    %v274 = vxor.u32 %v266, %v270
    %v275 = vxor.u32 %v267, %v271
    %v276 = vxor.u32 %v268, %v272
    %v277 = vand.u32 %v273, 1
    %v278 = vand.u32 %v274, 1
    %v279 = vand.u32 %v275, 1
    %v280 = vand.u32 %v276, 1
    %vm281 = vcmp.eq.s32.totalorder %v277, 0
    %vm282 = vcmp.eq.s32.totalorder %v278, 0
    %vm283 = vcmp.eq.s32.totalorder %v279, 0
    %vm284 = vcmp.eq.s32.totalorder %v280, 0
    %v285 = vmul.f32 %v219, 2.0
    %v286 = vmul.f32 %v220, 2.0
    %v287 = vmul.f32 %v221, 2.0
    %v288 = vmul.f32 %v222, 2.0
    %v289 = vsel %vm281, %v285, 0.0
    %v290 = vsel %vm282, %v286, 0.0
    %v291 = vsel %vm283, %v287, 0.0
    %v292 = vsel %vm284, %v288, 0.0
    %v293 = vpack.c.bf16 %v291, %v289
    %v294 = vpack.c.bf16 %v292, %v290
    %v295 = vld [vmem:[#allocation9] sm:$0xff]
    %v296 = vld [vmem:[#allocation9 + $0x8] sm:$0xff]
    %v297 = vld [vmem:[#allocation9 + $0x10] sm:$0xff]
    %v298 = vld [vmem:[#allocation9 + $0x18] sm:$0xff]
    %v299 = vld [vmem:[#allocation9 + $0x20] sm:$0xff]
    %v300 = vld [vmem:[#allocation9 + $0x28] sm:$0xff]
    %v301 = vld [vmem:[#allocation9 + $0x30] sm:$0xff]
    %v302 = vld [vmem:[#allocation9 + $0x38] sm:$0xff]
    %v303 = vld [vmem:[#allocation9 + $0x40] sm:$0xff]
    %v304 = vld [vmem:[#allocation9 + $0x48] sm:$0xff]
    %v305 = vld [vmem:[#allocation9 + $0x50] sm:$0xff]
    %v306 = vld [vmem:[#allocation9 + $0x58] sm:$0xff]
    %v307 = vld [vmem:[#allocation9 + $0x60] sm:$0xff]
    %v308 = vld [vmem:[#allocation9 + $0x68] sm:$0xff]
    %v309 = vld [vmem:[#allocation9 + $0x70] sm:$0xff]
    %v310 = vld [vmem:[#allocation9 + $0x78] sm:$0xff]
    %v311 = vld [vmem:[#allocation9 + $0x80] sm:$0xff]
    %v312 = vld [vmem:[#allocation9 + $0x88] sm:$0xff]
    %v313 = vld [vmem:[#allocation9 + $0x90] sm:$0xff]
    %v314 = vld [vmem:[#allocation9 + $0x98] sm:$0xff]
    %v315 = vld [vmem:[#allocation9 + $0xa0] sm:$0xff]
    %v316 = vld [vmem:[#allocation9 + $0xa8] sm:$0xff]
    %v317 = vld [vmem:[#allocation9 + $0xb0] sm:$0xff]
    %v318 = vld [vmem:[#allocation9 + $0xb8] sm:$0xff]
    %v319 = vld [vmem:[#allocation9 + $0xc0] sm:$0xff]
    %v320 = vld [vmem:[#allocation9 + $0xc8] sm:$0xff]
    %v321 = vld [vmem:[#allocation9 + $0xd0] sm:$0xff]
    %v322 = vld [vmem:[#allocation9 + $0xd8] sm:$0xff]
    %v323 = vld [vmem:[#allocation9 + $0xe0] sm:$0xff]
    %v324 = vld [vmem:[#allocation9 + $0xe8] sm:$0xff]
    %v325 = vld [vmem:[#allocation9 + $0xf0] sm:$0xff]
    %v326 = vld [vmem:[#allocation9 + $0xf8] sm:$0xff]
    %v359 = vunpack.c.l.b16 %v295
    %v360 = vunpack.c.h.b16 %v295
    %v361 = vunpack.c.l.b16 %v296
    %v362 = vunpack.c.h.b16 %v296
    %v363 = vunpack.c.l.b16 %v297
    %v364 = vunpack.c.h.b16 %v297
    %v365 = vunpack.c.l.b16 %v298
    %v366 = vunpack.c.h.b16 %v298
    %v367 = vunpack.c.l.b16 %v299
    %v368 = vunpack.c.h.b16 %v299
    %v369 = vunpack.c.l.b16 %v300
    %v370 = vunpack.c.h.b16 %v300
    %v371 = vunpack.c.l.b16 %v301
    %v372 = vunpack.c.h.b16 %v301
    %v373 = vunpack.c.l.b16 %v302
    %v374 = vunpack.c.h.b16 %v302
    %v375 = vunpack.c.l.b16 %v303
    %v376 = vunpack.c.h.b16 %v303
    %v377 = vunpack.c.l.b16 %v304
    %v378 = vunpack.c.h.b16 %v304
    %v379 = vunpack.c.l.b16 %v305
    %v380 = vunpack.c.h.b16 %v305
    %v381 = vunpack.c.l.b16 %v306
    %v382 = vunpack.c.h.b16 %v306
    %v383 = vunpack.c.l.b16 %v307
    %v384 = vunpack.c.h.b16 %v307
    %v385 = vunpack.c.l.b16 %v308
    %v386 = vunpack.c.h.b16 %v308
    %v387 = vunpack.c.l.b16 %v309
    %v388 = vunpack.c.h.b16 %v309
    %v389 = vunpack.c.l.b16 %v310
    %v390 = vunpack.c.h.b16 %v310
    %v391 = vunpack.c.l.b16 %v311
    %v392 = vunpack.c.h.b16 %v311
    %v393 = vunpack.c.l.b16 %v312
    %v394 = vunpack.c.h.b16 %v312
    %v395 = vunpack.c.l.b16 %v313
    %v396 = vunpack.c.h.b16 %v313
    %v397 = vunpack.c.l.b16 %v314
    %v398 = vunpack.c.h.b16 %v314
    %v399 = vunpack.c.l.b16 %v315
    %v400 = vunpack.c.h.b16 %v315
    %v401 = vunpack.c.l.b16 %v316
    %v402 = vunpack.c.h.b16 %v316
    %v403 = vunpack.c.l.b16 %v317
    %v404 = vunpack.c.h.b16 %v317
    %v405 = vunpack.c.l.b16 %v318
    %v406 = vunpack.c.h.b16 %v318
    %v407 = vunpack.c.l.b16 %v319
    %v408 = vunpack.c.h.b16 %v319
    %v409 = vunpack.c.l.b16 %v320
    %v410 = vunpack.c.h.b16 %v320
    %v411 = vunpack.c.l.b16 %v321
    %v412 = vunpack.c.h.b16 %v321
    %v413 = vunpack.c.l.b16 %v322
    %v414 = vunpack.c.h.b16 %v322
    %v415 = vunpack.c.l.b16 %v323
    %v416 = vunpack.c.h.b16 %v323
    %v417 = vunpack.c.l.b16 %v324
    %v418 = vunpack.c.h.b16 %v324
    %v419 = vunpack.c.l.b16 %v325
    %v420 = vunpack.c.h.b16 %v325
    %v421 = vunpack.c.l.b16 %v326
    %v422 = vunpack.c.h.b16 %v326
    %v423 = vpack.c.b16 %v361, %v359
    %v424 = vpack.c.b16 %v362, %v360
    %v425 = vpack.c.b16 %v365, %v363
    %v426 = vpack.c.b16 %v366, %v364
    %v427 = vpack.c.b16 %v369, %v367
    %v428 = vpack.c.b16 %v370, %v368
    %v429 = vpack.c.b16 %v373, %v371
    %v430 = vpack.c.b16 %v374, %v372
    %v431 = vpack.c.b16 %v377, %v375
    %v432 = vpack.c.b16 %v378, %v376
    %v433 = vpack.c.b16 %v381, %v379
    %v434 = vpack.c.b16 %v382, %v380
    %v435 = vpack.c.b16 %v385, %v383
    %v436 = vpack.c.b16 %v386, %v384
    %v437 = vpack.c.b16 %v389, %v387
    %v438 = vpack.c.b16 %v390, %v388
    %v439 = vpack.c.b16 %v393, %v391
    %v440 = vpack.c.b16 %v394, %v392
    %v441 = vpack.c.b16 %v397, %v395
    %v442 = vpack.c.b16 %v398, %v396
    %v443 = vpack.c.b16 %v401, %v399
    %v444 = vpack.c.b16 %v402, %v400
    %v445 = vpack.c.b16 %v405, %v403
    %v446 = vpack.c.b16 %v406, %v404
    %v447 = vpack.c.b16 %v409, %v407
    %v448 = vpack.c.b16 %v410, %v408
    %v449 = vpack.c.b16 %v413, %v411
    %v450 = vpack.c.b16 %v414, %v412
    %v451 = vpack.c.b16 %v417, %v415
    %v452 = vpack.c.b16 %v418, %v416
    %v453 = vpack.c.b16 %v421, %v419
    %v454 = vpack.c.b16 %v422, %v420
    %487 = vmatprep.subr.bf16.mxu0 %v424
    %488 = vmatpush1.bf16.msra.mxu0 %v423
    %489 = vmatprep.subr.bf16.mxu0 %v426
    %490 = vmatpush1.bf16.msra.mxu0 %v425
    %491 = vmatprep.subr.bf16.mxu0 %v428
    %492 = vmatpush1.bf16.msra.mxu0 %v427
    %493 = vmatprep.subr.bf16.mxu0 %v430
    %494 = vmatpush1.bf16.msra.mxu0 %v429
    %495 = vmatprep.subr.bf16.mxu0 %v432
    %496 = vmatpush1.bf16.msra.mxu0 %v431
    %497 = vmatprep.subr.bf16.mxu0 %v434
    %498 = vmatpush1.bf16.msra.mxu0 %v433
    %499 = vmatprep.subr.bf16.mxu0 %v436
    %500 = vmatpush1.bf16.msra.mxu0 %v435
    %501 = vmatprep.subr.bf16.mxu0 %v438
    %502 = vmatpush1.bf16.msra.mxu0 %v437
    %503 = vmatprep.subr.bf16.mxu0 %v440
    %504 = vmatpush1.bf16.msra.mxu0 %v439
    %505 = vmatprep.subr.bf16.mxu0 %v442
    %506 = vmatpush1.bf16.msra.mxu0 %v441
    %507 = vmatprep.subr.bf16.mxu0 %v444
    %508 = vmatpush1.bf16.msra.mxu0 %v443
    %509 = vmatprep.subr.bf16.mxu0 %v446
    %510 = vmatpush1.bf16.msra.mxu0 %v445
    %511 = vmatprep.subr.bf16.mxu0 %v448
    %512 = vmatpush1.bf16.msra.mxu0 %v447
    %513 = vmatprep.subr.bf16.mxu0 %v450
    %514 = vmatpush1.bf16.msra.mxu0 %v449
    %515 = vmatprep.subr.bf16.mxu0 %v452
    %516 = vmatpush1.bf16.msra.mxu0 %v451
    %517 = vmatprep.subr.bf16.mxu0 %v454
    %518 = vmatpush1.bf16.msra.mxu0 %v453
    %519 = vmatprep.mubr.bf16.mxu0 %v294
    %520 = vmatmul.mubr.bf16.gmra.mrb[0].mxu0 %v293
    %v521 = vpop.f32.mrb[0].mxu0
    %v522 = vadd.f32 0.0, %v521
    %v523 = vpop.f32.mrb[0].mxu0
    %v524 = vadd.f32 0.0, %v523
    %v525 = vpop.f32.mrb[0].mxu0
    %v526 = vadd.f32 0.0, %v525
    %v527 = vpop.f32.mrb[0].mxu0
    %v528 = vadd.f32 0.0, %v527
    %529 = vdwg.mxu0
    %v530 = vmax.f32 %v522, 0.0
    %v531 = vmax.f32 %v524, 0.0
    %v532 = vmax.f32 %v526, 0.0
    %v533 = vmax.f32 %v528, 0.0
    %s534 = sld [smem:[#allocation2 + $0x1]]
    %s535 = sadd.s32 %s534, 2654435761
    %s536 = smul.u32 %s535, 2654435761
    %v537 = vstv %s536
    %v538 = vadd.s32 %v235, %v537
    %v539 = vadd.s32 %v236, %v537
    %v540 = vadd.s32 %v237, %v537
    %v541 = vadd.s32 %v238, %v537
    %v542 = vshrl.u32 %v538, 16
    %v543 = vshrl.u32 %v539, 16
    %v544 = vshrl.u32 %v540, 16
    %v545 = vshrl.u32 %v541, 16
    %v546 = vxor.u32 %v538, %v542
    %v547 = vxor.u32 %v539, %v543
    %v548 = vxor.u32 %v540, %v544
    %v549 = vxor.u32 %v541, %v545
    %v550 = vmul.u32 %v546, 2146121005
    %v551 = vmul.u32 %v547, 2146121005
    %v552 = vmul.u32 %v548, 2146121005
    %v553 = vmul.u32 %v549, 2146121005
    %v554 = vshrl.u32 %v550, 15
    %v555 = vshrl.u32 %v551, 15
    %v556 = vshrl.u32 %v552, 15
    %v557 = vshrl.u32 %v553, 15
    %v558 = vxor.u32 %v550, %v554
    %v559 = vxor.u32 %v551, %v555
    %v560 = vxor.u32 %v552, %v556
    %v561 = vxor.u32 %v553, %v557
    %v562 = vmul.u32 %v558, 2221713035
    %v563 = vmul.u32 %v559, 2221713035
    %v564 = vmul.u32 %v560, 2221713035
    %v565 = vmul.u32 %v561, 2221713035
    %v566 = vshrl.u32 %v562, 16
    %v567 = vshrl.u32 %v563, 16
    %v568 = vshrl.u32 %v564, 16
    %v569 = vshrl.u32 %v565, 16
    %v570 = vxor.u32 %v562, %v566
    %v571 = vxor.u32 %v563, %v567
    %v572 = vxor.u32 %v564, %v568
    %v573 = vxor.u32 %v565, %v569
    %v574 = vand.u32 %v570, 1
    %v575 = vand.u32 %v571, 1
    %v576 = vand.u32 %v572, 1
    %v577 = vand.u32 %v573, 1
    %vm578 = vcmp.eq.s32.totalorder %v574, 0
    %vm579 = vcmp.eq.s32.totalorder %v575, 0
    %vm580 = vcmp.eq.s32.totalorder %v576, 0
    %vm581 = vcmp.eq.s32.totalorder %v577, 0
    %v582 = vmul.f32 %v530, 2.0
    %v583 = vmul.f32 %v531, 2.0
    %v584 = vmul.f32 %v532, 2.0
    %v585 = vmul.f32 %v533, 2.0
    %v586 = vsel %vm578, %v582, 0.0
    %v587 = vsel %vm579, %v583, 0.0
    %v588 = vsel %vm580, %v584, 0.0
    %v589 = vsel %vm581, %v585, 0.0
    %590 = vst [vmem:[#allocation10] sm:$0xff] %v586
    %591 = vst [vmem:[#allocation10 + $0x8] sm:$0xff] %v587
    %592 = vst [vmem:[#allocation10 + $0x10] sm:$0xff] %v588
    %593 = vst [vmem:[#allocation10 + $0x18] sm:$0xff] %v589
    // Predicated region
    $region34: #{tpu_custom_call.1} parent=1 // pred_check
      _
    $region35: #{tpu_custom_call.1} parent=1 // pred_check_branch
      %595 = sbr.rel (0) target = $region37
    $region36: #{tpu_custom_call.1} parent=1 // pred_region
      %s597 = ssub.s32 512, 512
      %598 = vsyncadd [#allocation4], %s597
      %s599 = sshll.u32 [#allocation10], 4
      %s600 = int_to_ptr.vmem [resolvable:$true] %s599
      %605 = dma.vmem_to_hbm [thread:$0]  %s600, 512, %s4, [#allocation4], 256, 256, 16
    $region37: #{tpu_custom_call.1} parent=1 // pred_fallthru
      _
    // Predicated region
    $region38: #{tpu_custom_call.1} parent=1 // pred_check
      _
    $region39: #{tpu_custom_call.1} parent=1 // pred_check_branch
      %607 = sbr.rel (0) target = $region41
    $region40: #{tpu_custom_call.1} parent=1 // pred_region
      %608 = dma.done [#allocation4], 512
    $region41: #{tpu_custom_call.1} parent=1 // pred_fallthru
      _
    %609 = vsyncpa [#allocation3], 1
    %610 = vsyncpa [#allocation8], 1
    %611 = vsyncpa [#allocation4], 1
    %612 = vsyncpa [#allocation5], 1

</llo_original>
